<compile_context>
chip_gen: v7x
topology: tpu7x:2x2x1
jax: 0.10.0
libtpu: 0.0.40
codegen_flags: <defaults>
</compile_context>

<pallas_src>
import math

import jax
import jax.numpy as jnp
from jax.experimental import pallas as pl
from jax.experimental.pallas import tpu as pltpu

LANE = 128      # lane width (last-dim tiling unit)
SUBLANE = 8     # f32 sublane count (second-to-last dim tiling unit)


def _round_up(n, m):
    return ((n + m - 1) // m) * m


def _pad_to(a, shape):
    """Zero-pad array `a` up to `shape` (no-op if already that shape)."""
    pads = [(0, t - s) for s, t in zip(a.shape, shape)]
    if all(p == (0, 0) for p in pads):
        return a
    return jnp.pad(a, pads)


def _dqn_kernel(x_ref, w1_ref, b1_ref, w2_ref, b2_ref, w3_ref, b3_ref, o_ref):
    """Fused 3-layer MLP on one (tb, state_size) batch tile, all in VMEM.

    fc1 runs on the VPU in f32 (state_size broadcast FMAs); fc2/fc3 use the
    MXU with bf16 operands and f32 accumulation; bias-add and ReLU in f32.
    """
    x = x_ref[...]                                   # [tb, S]   f32
    w1 = w1_ref[...]                                 # [S, 128]  f32
    state_size = x.shape[1]

    # fc1 on the VPU: h1 = b1 + sum_s x[:, s] * w1[s, :]   (static unroll, S=2)
    h1 = b1_ref[...]                                 # [1, 128] -> broadcasts
    for s in range(state_size):
        h1 = h1 + x[:, s:s + 1] * w1[s:s + 1, :]     # [tb, 128] f32
    h1 = jnp.maximum(h1, 0.0).astype(jnp.bfloat16)

    # fc2 on the MXU (128x128 tile).
    h2 = jnp.dot(h1, w2_ref[...],
                 preferred_element_type=jnp.float32) + b2_ref[...]
    h2 = jnp.maximum(h2, 0.0).astype(jnp.bfloat16)   # [tb, 128]

    # fc3 on the MXU, output lanes = action_size (small masked store is cheap).
    out = jnp.dot(h2, w3_ref[...],
                  preferred_element_type=jnp.float32) + b3_ref[...]
    o_ref[...] = out.astype(o_ref.dtype)             # [tb, action_size] f32


def prepare_padded_params(params):
    """One-time padding / casting of weights (call at init / target-net sync).

    Input params layout (weights already [in, out]):
      w1[S,24] b1[1,24]  w2[24,48] b2[1,48]  w3[48,A] b3[1,A]
    """
    w1, b1 = params["w1"], params["b1"]
    w2, b2 = params["w2"], params["b2"]
    w3, b3 = params["w3"], params["b3"]

    state_size = w1.shape[0]
    action_size = w3.shape[1]
    k_h1 = _round_up(w1.shape[1], LANE)     # 24 -> 128
    k_h2 = _round_up(w2.shape[1], LANE)     # 48 -> 128

    return {
        "state_size": state_size,
        "action_size": action_size,
        # fc1 stays f32 (VPU path); padded only on the output-lane axis.
        "w1p": _pad_to(w1, (state_size, k_h1)).astype(jnp.float32),
        "b1p": _pad_to(b1, (1, k_h1)).astype(jnp.float32),
        # fc2/fc3 bf16 MXU operands, f32 biases.
        "w2p": _pad_to(w2, (k_h1, k_h2)).astype(jnp.bfloat16),
        "b2p": _pad_to(b2, (1, k_h2)).astype(jnp.float32),
        "w3p": _pad_to(w3, (k_h2, action_size)).astype(jnp.bfloat16),
        "b3p": _pad_to(b3, (1, action_size)).astype(jnp.float32),
    }


def dqn_forward(x, padded, *, tb_max=2048):
    """Fused DQN forward pass as a single Pallas call.

    x: [B, state_size] float32
    padded: output of prepare_padded_params
    returns: [B, action_size] float32
    """
    batch, state_size = x.shape
    assert state_size == padded["state_size"]
    action_size = padded["action_size"]
    k_h1 = padded["w1p"].shape[1]
    k_h2 = padded["w2p"].shape[1]

    # Batch tiling: n grid steps, tile = round_up(cdiv(batch, n), 8) rows.
    # Typical replay batches (<= tb_max) run as a single step; larger batches
    # split evenly so tail padding never doubles the work.
    n_steps = max(1, pl.cdiv(batch, tb_max))
    tb = _round_up(pl.cdiv(batch, n_steps), SUBLANE)
    b_pad = n_steps * tb
    grid = (n_steps,)

    # Only a (cheap) row pad when batch isn't already aligned; no lane padding.
    xp = _pad_to(x, (b_pad, state_size)).astype(jnp.float32)

    w1p, b1p = padded["w1p"], padded["b1p"]
    w2p, b2p = padded["w2p"], padded["b2p"]
    w3p, b3p = padded["w3p"], padded["b3p"]

    # Weights/biases stay resident in VMEM (index_map pinned to block (0, 0)).
    resident = lambda a: pl.BlockSpec(a.shape, lambda i: (0, 0))

    flops = 2 * b_pad * (state_size * k_h1 + k_h1 * k_h2 + k_h2 * action_size)
    bytes_accessed = (
        xp.size * 4
        + w1p.size * 4 + b1p.size * 4
        + w2p.size * 2 + b2p.size * 4
        + w3p.size * 2 + b3p.size * 4
        + b_pad * action_size * 4
    )

    out = pl.pallas_call(
        _dqn_kernel,
        out_shape=jax.ShapeDtypeStruct((b_pad, action_size), jnp.float32),
        grid=grid,
        in_specs=[
            pl.BlockSpec((tb, state_size), lambda i: (i, 0)),
            resident(w1p), resident(b1p),
            resident(w2p), resident(b2p),
            resident(w3p), resident(b3p),
        ],
        out_specs=pl.BlockSpec((tb, action_size), lambda i: (i, 0)),
        compiler_params=pltpu.CompilerParams(
            dimension_semantics=("parallel",)),
        cost_estimate=pl.CostEstimate(
            flops=flops, transcendentals=0, bytes_accessed=bytes_accessed),
    )(xp, w1p, b1p, w2p, b2p, w3p, b3p)

    if b_pad != batch:
        out = out[:batch]
    return out


def init_dqn_params(key, state_size, action_size):
    """Deterministic init mirroring nn.Linear's default (Kaiming-uniform-ish)."""
    def linear(k, fan_in, fan_out):
        kw, kb = jax.random.split(k)
        bound = 1.0 / math.sqrt(fan_in)
        # Stored as [in, out] (already transposed relative to PyTorch weight).
        w = jax.random.uniform(kw, (fan_in, fan_out), jnp.float32, -bound, bound)
        b = jax.random.uniform(kb, (1, fan_out), jnp.float32, -bound, bound)
        return w, b

    k1, k2, k3 = jax.random.split(key, 3)
    w1, b1 = linear(k1, state_size, 24)
    w2, b2 = linear(k2, 24, 48)
    w3, b3 = linear(k3, 48, action_size)
    return {"w1": w1, "b1": b1, "w2": w2, "b2": b2, "w3": w3, "b3": b3}


def dqn_reference(x, params):
    """Pure-JAX f32 reference for correctness checking."""
    h1 = jnp.maximum(x @ params["w1"] + params["b1"], 0.0)
    h2 = jnp.maximum(h1 @ params["w2"] + params["b2"], 0.0)
    return h2 @ params["w3"] + params["b3"]


if __name__ == "__main__":
    # MountainCar-style sizes: state_size=2, action_size=3.
    state_size, action_size = 2, 3

    key = jax.random.PRNGKey(0)
    k_params, k_small, k_large = jax.random.split(key, 3)
    params = init_dqn_params(k_params, state_size, action_size)
    padded = prepare_padded_params(params)   # one-time pad/cast, reused per call

    # Small inference-style batch (exercises row padding to 8 sublanes).
    x_small = jax.random.normal(k_small, (2, state_size), jnp.float32)
    out_small = jax.block_until_ready(dqn_forward(x_small, padded))
    ref_small = dqn_reference(x_small, params)
    assert out_small.shape == (2, action_size)
    # fc1 is exact f32; fc2/fc3 use bf16 operands with f32 accumulation.
    assert jnp.allclose(out_small, ref_small, atol=2e-2, rtol=2e-2), (
        out_small, ref_small)

    # Replay-minibatch-style batch (single grid step, no padding: 1000 % 8 == 0).
    x_large = jax.random.normal(k_large, (1000, state_size), jnp.float32)
    out_large = jax.block_until_ready(dqn_forward(x_large, padded))
    ref_large = dqn_reference(x_large, params)
    assert out_large.shape == (1000, action_size)
    assert jnp.allclose(out_large, ref_large, atol=2e-2, rtol=2e-2)

    # Multi-step grid path (batch > tb_max) to exercise the batch tiling.
    x_huge = jax.random.normal(k_large, (4100, state_size), jnp.float32)
    out_huge = jax.block_until_ready(dqn_forward(x_huge, padded))
    ref_huge = dqn_reference(x_huge, params)
    assert out_huge.shape == (4100, action_size)
    assert jnp.allclose(out_huge, ref_huge, atol=2e-2, rtol=2e-2)

    print("KERNEL_OK")
</pallas_src>

<mosaic_0001>
module attributes {stable_mosaic.version = 11 : i64} {
  func.func @_dqn_kernel(%arg0: i32, %arg1: memref<8x2xf32, #tpu.memory_space<vmem>>, %arg2: memref<2x128xf32, #tpu.memory_space<vmem>>, %arg3: memref<1x128xf32, #tpu.memory_space<vmem>>, %arg4: memref<128x128xbf16, #tpu.memory_space<vmem>>, %arg5: memref<1x128xf32, #tpu.memory_space<vmem>>, %arg6: memref<128x3xbf16, #tpu.memory_space<vmem>>, %arg7: memref<1x3xf32, #tpu.memory_space<vmem>>, %arg8: memref<8x3xf32, #tpu.memory_space<vmem>>) attributes {dimension_semantics = [#tpu.dimension_semantics<parallel>], iteration_bounds = array<i64: 1>, scalar_prefetch = 0 : i64, scratch_operands = 0 : i64, tpu.core_type = #tpu.core_type<tc>, window_params = [{transform_indices = @transform_0, window_bounds = array<i64: 8, 2>}, {pipeline_mode = #tpu.pipeline_mode<synchronous>, transform_indices = @transform_1, window_bounds = array<i64: 2, 128>}, {pipeline_mode = #tpu.pipeline_mode<synchronous>, transform_indices = @transform_2, window_bounds = array<i64: 1, 128>}, {pipeline_mode = #tpu.pipeline_mode<synchronous>, transform_indices = @transform_3, window_bounds = array<i64: 128, 128>}, {pipeline_mode = #tpu.pipeline_mode<synchronous>, transform_indices = @transform_4, window_bounds = array<i64: 1, 128>}, {pipeline_mode = #tpu.pipeline_mode<synchronous>, transform_indices = @transform_5, window_bounds = array<i64: 128, 3>}, {pipeline_mode = #tpu.pipeline_mode<synchronous>, transform_indices = @transform_6, window_bounds = array<i64: 1, 3>}, {transform_indices = @transform_7, window_bounds = array<i64: 8, 3>}]} {
    %c0 = arith.constant 0 : index
    %c0_0 = arith.constant 0 : index
    %0 = vector.load %arg1[%c0, %c0_0] : memref<8x2xf32, #tpu.memory_space<vmem>>, vector<8x2xf32>
    %c0_1 = arith.constant 0 : index
    %c0_2 = arith.constant 0 : index
    %1 = vector.load %arg2[%c0_1, %c0_2] : memref<2x128xf32, #tpu.memory_space<vmem>>, vector<2x128xf32>
    %c0_3 = arith.constant 0 : index
    %c0_4 = arith.constant 0 : index
    %2 = vector.load %arg3[%c0_3, %c0_4] : memref<1x128xf32, #tpu.memory_space<vmem>>, vector<1x128xf32>
    %3 = vector.extract_strided_slice %0 {offsets = [0, 0], sizes = [8, 1], strides = [1, 1]} : vector<8x2xf32> to vector<8x1xf32>
    %4 = vector.extract_strided_slice %1 {offsets = [0, 0], sizes = [1, 128], strides = [1, 1]} : vector<2x128xf32> to vector<1x128xf32>
    %5 = vector.broadcast %3 : vector<8x1xf32> to vector<8x128xf32>
    %6 = vector.broadcast %4 : vector<1x128xf32> to vector<8x128xf32>
    %7 = arith.mulf %5, %6 : vector<8x128xf32>
    %8 = vector.broadcast %2 : vector<1x128xf32> to vector<8x128xf32>
    %9 = arith.addf %8, %7 : vector<8x128xf32>
    %10 = vector.extract_strided_slice %0 {offsets = [0, 1], sizes = [8, 1], strides = [1, 1]} : vector<8x2xf32> to vector<8x1xf32>
    %11 = vector.extract_strided_slice %1 {offsets = [1, 0], sizes = [1, 128], strides = [1, 1]} : vector<2x128xf32> to vector<1x128xf32>
    %12 = vector.broadcast %10 : vector<8x1xf32> to vector<8x128xf32>
    %13 = vector.broadcast %11 : vector<1x128xf32> to vector<8x128xf32>
    %14 = arith.mulf %12, %13 : vector<8x128xf32>
    %15 = arith.addf %9, %14 : vector<8x128xf32>
    %cst = arith.constant 0.000000e+00 : f32
    %16 = vector.broadcast %cst : f32 to vector<8x128xf32>
    %17 = arith.maximumf %15, %16 : vector<8x128xf32>
    %18 = arith.truncf %17 : vector<8x128xf32> to vector<8x128xbf16>
    %c0_5 = arith.constant 0 : index
    %c0_6 = arith.constant 0 : index
    %19 = vector.load %arg4[%c0_5, %c0_6] : memref<128x128xbf16, #tpu.memory_space<vmem>>, vector<128x128xbf16>
    %cst_7 = arith.constant dense<0.000000e+00> : vector<8x128xf32>
    %20 = tpu.matmul %18, %19, %cst_7 {dimension_numbers = #tpu.dot_dimension_numbers<[1], [0], [0], [1], [0, 0, 1, 1], [], []>} : vector<8x128xbf16>, vector<128x128xbf16>, vector<8x128xf32> -> vector<8x128xf32>
    %c0_8 = arith.constant 0 : index
    %c0_9 = arith.constant 0 : index
    %21 = vector.load %arg5[%c0_8, %c0_9] : memref<1x128xf32, #tpu.memory_space<vmem>>, vector<1x128xf32>
    %22 = vector.broadcast %21 : vector<1x128xf32> to vector<8x128xf32>
    %23 = arith.addf %20, %22 : vector<8x128xf32>
    %cst_10 = arith.constant 0.000000e+00 : f32
    %24 = vector.broadcast %cst_10 : f32 to vector<8x128xf32>
    %25 = arith.maximumf %23, %24 : vector<8x128xf32>
    %26 = arith.truncf %25 : vector<8x128xf32> to vector<8x128xbf16>
    %c0_11 = arith.constant 0 : index
    %c0_12 = arith.constant 0 : index
    %27 = vector.load %arg6[%c0_11, %c0_12] : memref<128x3xbf16, #tpu.memory_space<vmem>>, vector<128x3xbf16>
    %cst_13 = arith.constant dense<0.000000e+00> : vector<8x3xf32>
    %28 = tpu.matmul %26, %27, %cst_13 {dimension_numbers = #tpu.dot_dimension_numbers<[1], [0], [0], [1], [0, 0, 1, 1], [], []>} : vector<8x128xbf16>, vector<128x3xbf16>, vector<8x3xf32> -> vector<8x3xf32>
    %c0_14 = arith.constant 0 : index
    %c0_15 = arith.constant 0 : index
    %29 = vector.load %arg7[%c0_14, %c0_15] : memref<1x3xf32, #tpu.memory_space<vmem>>, vector<1x3xf32>
    %30 = vector.broadcast %29 : vector<1x3xf32> to vector<8x3xf32>
    %31 = arith.addf %28, %30 : vector<8x3xf32>
    %c0_16 = arith.constant 0 : index
    %c0_17 = arith.constant 0 : index
    %32 = vector.load %arg8[%c0_16, %c0_17] : memref<8x3xf32, #tpu.memory_space<vmem>>, vector<8x3xf32>
    tpu.vector_store %arg8[%c0_16, %c0_17], %31 {strides = array<i32>} : memref<8x3xf32, #tpu.memory_space<vmem>>, vector<8x3xf32>,
    return
  }
  func.func @transform_0(%arg0: i32) -> (i32, i32) {
    %c0_i32 = arith.constant 0 : i32
    %c0_i32_0 = arith.constant 0 : i32
    return %arg0, %c0_i32 : i32, i32
  }
  func.func @transform_1(%arg0: i32) -> (i32, i32) {
    %c0_i32 = arith.constant 0 : i32
    %c0_i32_0 = arith.constant 0 : i32
    %c0_i32_1 = arith.constant 0 : i32
    return %c0_i32, %c0_i32_0 : i32, i32
  }
  func.func @transform_2(%arg0: i32) -> (i32, i32) {
    %c0_i32 = arith.constant 0 : i32
    %c0_i32_0 = arith.constant 0 : i32
    %c0_i32_1 = arith.constant 0 : i32
    return %c0_i32, %c0_i32_0 : i32, i32
  }
  func.func @transform_3(%arg0: i32) -> (i32, i32) {
    %c0_i32 = arith.constant 0 : i32
    %c0_i32_0 = arith.constant 0 : i32
    %c0_i32_1 = arith.constant 0 : i32
    return %c0_i32, %c0_i32_0 : i32, i32
  }
  func.func @transform_4(%arg0: i32) -> (i32, i32) {
    %c0_i32 = arith.constant 0 : i32
    %c0_i32_0 = arith.constant 0 : i32
    %c0_i32_1 = arith.constant 0 : i32
    return %c0_i32, %c0_i32_0 : i32, i32
  }
  func.func @transform_5(%arg0: i32) -> (i32, i32) {
    %c0_i32 = arith.constant 0 : i32
    %c0_i32_0 = arith.constant 0 : i32
    %c0_i32_1 = arith.constant 0 : i32
    return %c0_i32, %c0_i32_0 : i32, i32
  }
  func.func @transform_6(%arg0: i32) -> (i32, i32) {
    %c0_i32 = arith.constant 0 : i32
    %c0_i32_0 = arith.constant 0 : i32
    %c0_i32_1 = arith.constant 0 : i32
    return %c0_i32, %c0_i32_0 : i32, i32
  }
  func.func @transform_7(%arg0: i32) -> (i32, i32) {
    %c0_i32 = arith.constant 0 : i32
    %c0_i32_0 = arith.constant 0 : i32
    return %arg0, %c0_i32 : i32, i32
  }
}

</mosaic_0001>

<llo_original>
// kernel: tpu_custom_call.1
$region0: #{tpu_custom_call.1}
  #allocation0 [shape = 'u32[]', space=smem, size = 0x4, offset = 0x4, fixed_abs, tag = 'smem constant byte address 0x4 - core index']
  #allocation1 [shape = 'u32[144,128]{1,0:T(1,128)}', space=vmem, size = 0x12000, scoped, tag = 'internal scratch']
  %s0 = inlined_call_operand.vmem [shape: f32[8,2], index: 0, kind: input, shape index: {}]
  %s1 = inlined_call_operand.vmem [shape: f32[2,128], index: 1, kind: input, shape index: {}]
  %s2 = inlined_call_operand.vmem [shape: f32[1,128], index: 2, kind: input, shape index: {}]
  %s3 = inlined_call_operand.vmem [shape: bf16[128,128], index: 3, kind: input, shape index: {}]
  %s4 = inlined_call_operand.vmem [shape: f32[1,128], index: 4, kind: input, shape index: {}]
  %s5 = inlined_call_operand.vmem [shape: bf16[128,3], index: 5, kind: input, shape index: {}]
  %s6 = inlined_call_operand.vmem [shape: f32[1,3], index: 6, kind: input, shape index: {}]
  %s7 = inlined_call_operand.vmem [shape: f32[8,3], index: 7, kind: output, shape index: {}]
  %s8 = sld [smem:[#allocation0]]
  $region38: #{tpu_custom_call.1} parent=0
    _
  %s10 = ssub.s32 1, %s8
  %s11 = scalar_select 0, %s10, %s8
  // Predicated region
  $region2: #{tpu_custom_call.1} parent=0 // pred_check
    _
  $region3: #{tpu_custom_call.1} parent=0 // pred_check_branch
    %13 = sbr.rel (0) target = $region5
  $region4: #{tpu_custom_call.1} parent=0 // pred_region
    _
  $region5: #{tpu_custom_call.1} parent=0 // pred_fallthru
    _
  // Predicated region
  $region6: #{tpu_custom_call.1} parent=0 // pred_check
    _
  $region7: #{tpu_custom_call.1} parent=0 // pred_check_branch
    %15 = sbr.rel (0) target = $region9
  $region8: #{tpu_custom_call.1} parent=0 // pred_region
    _
  $region9: #{tpu_custom_call.1} parent=0 // pred_fallthru
    _
  // Predicated region
  $region10: #{tpu_custom_call.1} parent=0 // pred_check
    _
  $region11: #{tpu_custom_call.1} parent=0 // pred_check_branch
    %17 = sbr.rel (0) target = $region13
  $region12: #{tpu_custom_call.1} parent=0 // pred_region
    _
  $region13: #{tpu_custom_call.1} parent=0 // pred_fallthru
    _
  // Predicated region
  $region14: #{tpu_custom_call.1} parent=0 // pred_check
    _
  $region15: #{tpu_custom_call.1} parent=0 // pred_check_branch
    %19 = sbr.rel (0) target = $region17
  $region16: #{tpu_custom_call.1} parent=0 // pred_region
    _
  $region17: #{tpu_custom_call.1} parent=0 // pred_fallthru
    _
  // Predicated region
  $region18: #{tpu_custom_call.1} parent=0 // pred_check
    _
  $region19: #{tpu_custom_call.1} parent=0 // pred_check_branch
    %21 = sbr.rel (0) target = $region21
  $region20: #{tpu_custom_call.1} parent=0 // pred_region
    _
  $region21: #{tpu_custom_call.1} parent=0 // pred_fallthru
    _
  // Predicated region
  $region22: #{tpu_custom_call.1} parent=0 // pred_check
    _
  $region23: #{tpu_custom_call.1} parent=0 // pred_check_branch
    %23 = sbr.rel (0) target = $region25
  $region24: #{tpu_custom_call.1} parent=0 // pred_region
    _
  $region25: #{tpu_custom_call.1} parent=0 // pred_fallthru
    _
  // Predicated region
  $region26: #{tpu_custom_call.1} parent=0 // pred_check
    _
  $region27: #{tpu_custom_call.1} parent=0 // pred_check_branch
    %25 = sbr.rel (0) target = $region29
  $region28: #{tpu_custom_call.1} parent=0 // pred_region
    _
  $region29: #{tpu_custom_call.1} parent=0 // pred_fallthru
    _
  %v27 = vld [vmem:[%s0] sm:$0xff]
  %v28 = vld [vmem:[%s1] sm:$0x3]
  %v29 = vld [vmem:[%s2] sm:$0x1]
  %31 = vset.pattern.permute.xlu0 0
  %32 = vperm.xlu0 %31, %v27
  %v33 = vpop.permute.xlu0 %32
  %v35 = vlaneseq
  %v36 = vshrl.u32 %v35, 7
  %v37 = vsub.s32 0, %v36
  %v38 = vrot.slane %v28, %v37
  %v39 = vmul.f32 %v33, %v38
  %v41 = vlaneseq
  %v42 = vshrl.u32 %v41, 7
  %v43 = vsub.s32 0, %v42
  %v44 = vrot.slane %v29, %v43
  %v46 = vadd.f32 %v44, %v39
  %47 = vset.pattern.permute.xlu0 1
  %48 = vperm.xlu0 %47, %v27
  %v49 = vpop.permute.xlu0 %48
  %v51 = vlaneseq
  %v52 = vshrl.u32 %v51, 7
  %v53 = vsub.s32 1, %v52
  %v54 = vrot.slane %v28, %v53
  %v55 = vmul.f32 %v49, %v54
  %v56 = vadd.f32 %v46, %v55
  %v57 = vmax.f32 %v56, 0.0
  %v58 = vpack.c.bf16 %v57, %v57
  %v59 = vld [vmem:[%s3] sm:$0xf]
  %v60 = vld [vmem:[%s3 + $0x4] sm:$0xf]
  %v61 = vld [vmem:[%s3 + $0x8] sm:$0xf]
  %v62 = vld [vmem:[%s3 + $0xc] sm:$0xf]
  %v63 = vld [vmem:[%s3 + $0x10] sm:$0xf]
  %v64 = vld [vmem:[%s3 + $0x14] sm:$0xf]
  %v65 = vld [vmem:[%s3 + $0x18] sm:$0xf]
  %v66 = vld [vmem:[%s3 + $0x1c] sm:$0xf]
  %v67 = vld [vmem:[%s3 + $0x20] sm:$0xf]
  %v68 = vld [vmem:[%s3 + $0x24] sm:$0xf]
  %v69 = vld [vmem:[%s3 + $0x28] sm:$0xf]
  %v70 = vld [vmem:[%s3 + $0x2c] sm:$0xf]
  %v71 = vld [vmem:[%s3 + $0x30] sm:$0xf]
  %v72 = vld [vmem:[%s3 + $0x34] sm:$0xf]
  %v73 = vld [vmem:[%s3 + $0x38] sm:$0xf]
  %v74 = vld [vmem:[%s3 + $0x3c] sm:$0xf]
  %v75 = vld [vmem:[%s4] sm:$0x1]
  %v77 = vlaneseq
  %v78 = vshrl.u32 %v77, 7
  %v79 = vsub.s32 0, %v78
  %v80 = vrot.slane %v75, %v79
  %v98 = vunpack.c.l.b16 %v59
  %v99 = vunpack.c.l.b16 %v60
  %v100 = vunpack.c.l.b16 %v61
  %v101 = vunpack.c.l.b16 %v62
  %v102 = vunpack.c.l.b16 %v63
  %v103 = vunpack.c.l.b16 %v64
  %v104 = vunpack.c.l.b16 %v65
  %v105 = vunpack.c.l.b16 %v66
  %v106 = vunpack.c.l.b16 %v67
  %v107 = vunpack.c.l.b16 %v68
  %v108 = vunpack.c.l.b16 %v69
  %v109 = vunpack.c.l.b16 %v70
  %v110 = vunpack.c.l.b16 %v71
  %v111 = vunpack.c.l.b16 %v72
  %v112 = vunpack.c.l.b16 %v73
  %v113 = vunpack.c.l.b16 %v74
  %v114 = vpack.c.b16 %v99, %v98
  %v115 = vpack.c.b16 %v101, %v100
  %v116 = vpack.c.b16 %v103, %v102
  %v117 = vpack.c.b16 %v105, %v104
  %v118 = vpack.c.b16 %v107, %v106
  %v119 = vpack.c.b16 %v109, %v108
  %v120 = vpack.c.b16 %v111, %v110
  %v121 = vpack.c.b16 %v113, %v112
  %130 = vmatprep.subr.bf16.mxu0 0
  %131 = vmatpush1.bf16.msra.mxu0 %v114
  %132 = vmatprep.subr.bf16.mxu0 0
  %133 = vmatpush1.bf16.msra.mxu0 %v115
  %134 = vmatprep.subr.bf16.mxu0 0
  %135 = vmatpush1.bf16.msra.mxu0 %v116
  %136 = vmatprep.subr.bf16.mxu0 0
  %137 = vmatpush1.bf16.msra.mxu0 %v117
  %138 = vmatprep.subr.bf16.mxu0 0
  %139 = vmatpush1.bf16.msra.mxu0 %v118
  %140 = vmatprep.subr.bf16.mxu0 0
  %141 = vmatpush1.bf16.msra.mxu0 %v119
  %142 = vmatprep.subr.bf16.mxu0 0
  %143 = vmatpush1.bf16.msra.mxu0 %v120
  %144 = vmatprep.subr.bf16.mxu0 0
  %145 = vmatpush1.bf16.msra.mxu0 %v121
  %146 = vmatprep.subr.bf16.mxu0 0
  %147 = vmatpush1.bf16.msra.mxu0 0
  %148 = vmatprep.subr.bf16.mxu0 0
  %149 = vmatpush1.bf16.msra.mxu0 0
  %150 = vmatprep.subr.bf16.mxu0 0
  %151 = vmatpush1.bf16.msra.mxu0 0
  %152 = vmatprep.subr.bf16.mxu0 0
  %153 = vmatpush1.bf16.msra.mxu0 0
  %154 = vmatprep.subr.bf16.mxu0 0
  %155 = vmatpush1.bf16.msra.mxu0 0
  %156 = vmatprep.subr.bf16.mxu0 0
  %157 = vmatpush1.bf16.msra.mxu0 0
  %158 = vmatprep.subr.bf16.mxu0 0
  %159 = vmatpush1.bf16.msra.mxu0 0
  %160 = vmatprep.subr.bf16.mxu0 0
  %161 = vmatpush1.bf16.msra.mxu0 0
  %162 = vmatprep.mubr.bf16.mxu0 0
  %163 = vmatmul.mubr.bf16.gmra.mrb[0].mxu0 %v58
  %v164 = vpop.f32.mrb[0].mxu0
  %v165 = vadd.f32 %v80, %v164
  %v166 = vpop.f32.mrb[0].mxu0
  %v167 = vpop.f32.mrb[0].mxu0
  %v168 = vpop.f32.mrb[0].mxu0
  %169 = vdwg.mxu0
  %v170 = vmax.f32 %v165, 0.0
  %v171 = vpack.c.bf16 %v170, %v170
  %v172 = vld [vmem:[%s5] sm:$0xf]
  %v173 = vld [vmem:[%s5 + $0x4] sm:$0xf]
  %v174 = vld [vmem:[%s5 + $0x8] sm:$0xf]
  %v175 = vld [vmem:[%s5 + $0xc] sm:$0xf]
  %v176 = vld [vmem:[%s5 + $0x10] sm:$0xf]
  %v177 = vld [vmem:[%s5 + $0x14] sm:$0xf]
  %v178 = vld [vmem:[%s5 + $0x18] sm:$0xf]
  %v179 = vld [vmem:[%s5 + $0x1c] sm:$0xf]
  %v180 = vld [vmem:[%s5 + $0x20] sm:$0xf]
  %v181 = vld [vmem:[%s5 + $0x24] sm:$0xf]
  %v182 = vld [vmem:[%s5 + $0x28] sm:$0xf]
  %v183 = vld [vmem:[%s5 + $0x2c] sm:$0xf]
  %v184 = vld [vmem:[%s5 + $0x30] sm:$0xf]
  %v185 = vld [vmem:[%s5 + $0x34] sm:$0xf]
  %v186 = vld [vmem:[%s5 + $0x38] sm:$0xf]
  %v187 = vld [vmem:[%s5 + $0x3c] sm:$0xf]
  %v188 = vld [vmem:[%s6] sm:$0x1]
  %v190 = vlaneseq
  %v191 = vshrl.u32 %v190, 7
  %v192 = vsub.s32 0, %v191
  %v193 = vrot.slane %v188, %v192
  %v211 = vunpack.c.l.b16 %v172
  %v212 = vunpack.c.l.b16 %v173
  %v213 = vunpack.c.l.b16 %v174
  %v214 = vunpack.c.l.b16 %v175
  %v215 = vunpack.c.l.b16 %v176
  %v216 = vunpack.c.l.b16 %v177
  %v217 = vunpack.c.l.b16 %v178
  %v218 = vunpack.c.l.b16 %v179
  %v219 = vunpack.c.l.b16 %v180
  %v220 = vunpack.c.l.b16 %v181
  %v221 = vunpack.c.l.b16 %v182
  %v222 = vunpack.c.l.b16 %v183
  %v223 = vunpack.c.l.b16 %v184
  %v224 = vunpack.c.l.b16 %v185
  %v225 = vunpack.c.l.b16 %v186
  %v226 = vunpack.c.l.b16 %v187
  %v227 = vpack.c.b16 %v212, %v211
  %v228 = vpack.c.b16 %v214, %v213
  %v229 = vpack.c.b16 %v216, %v215
  %v230 = vpack.c.b16 %v218, %v217
  %v231 = vpack.c.b16 %v220, %v219
  %v232 = vpack.c.b16 %v222, %v221
  %v233 = vpack.c.b16 %v224, %v223
  %v234 = vpack.c.b16 %v226, %v225
  %243 = vmatprep.subr.bf16.mxu0 0
  %244 = vmatpush1.bf16.msra.mxu0 %v227
  %245 = vmatprep.subr.bf16.mxu0 0
  %246 = vmatpush1.bf16.msra.mxu0 %v228
  %247 = vmatprep.subr.bf16.mxu0 0
  %248 = vmatpush1.bf16.msra.mxu0 %v229
  %249 = vmatprep.subr.bf16.mxu0 0
  %250 = vmatpush1.bf16.msra.mxu0 %v230
  %251 = vmatprep.subr.bf16.mxu0 0
  %252 = vmatpush1.bf16.msra.mxu0 %v231
  %253 = vmatprep.subr.bf16.mxu0 0
  %254 = vmatpush1.bf16.msra.mxu0 %v232
  %255 = vmatprep.subr.bf16.mxu0 0
  %256 = vmatpush1.bf16.msra.mxu0 %v233
  %257 = vmatprep.subr.bf16.mxu0 0
  %258 = vmatpush1.bf16.msra.mxu0 %v234
  %259 = vmatprep.subr.bf16.mxu0 0
  %260 = vmatpush1.bf16.msra.mxu0 0
  %261 = vmatprep.subr.bf16.mxu0 0
  %262 = vmatpush1.bf16.msra.mxu0 0
  %263 = vmatprep.subr.bf16.mxu0 0
  %264 = vmatpush1.bf16.msra.mxu0 0
  %265 = vmatprep.subr.bf16.mxu0 0
  %266 = vmatpush1.bf16.msra.mxu0 0
  %267 = vmatprep.subr.bf16.mxu0 0
  %268 = vmatpush1.bf16.msra.mxu0 0
  %269 = vmatprep.subr.bf16.mxu0 0
  %270 = vmatpush1.bf16.msra.mxu0 0
  %271 = vmatprep.subr.bf16.mxu0 0
  %272 = vmatpush1.bf16.msra.mxu0 0
  %273 = vmatprep.subr.bf16.mxu0 0
  %274 = vmatpush1.bf16.msra.mxu0 0
  %275 = vmatprep.mubr.bf16.mxu0 0
  %276 = vmatmul.mubr.bf16.gmra.mrb[0].mxu0 %v171
  %v277 = vpop.f32.mrb[0].mxu0
  %v278 = vadd.f32 %v193, %v277
  %v279 = vpop.f32.mrb[0].mxu0
  %v280 = vpop.f32.mrb[0].mxu0
  %v281 = vpop.f32.mrb[0].mxu0
  %282 = vdwg.mxu0
  %vm283 = vcmask 23552
  %284 = vst.msk [vmem:[%s7] sm:$0xff] %vm283, %v278
  // Predicated region
  $region30: #{tpu_custom_call.1} parent=0 // pred_check
    _
  $region31: #{tpu_custom_call.1} parent=0 // pred_check_branch
    %286 = sbr.rel (0) target = $region33
  $region32: #{tpu_custom_call.1} parent=0 // pred_region
    _
  $region33: #{tpu_custom_call.1} parent=0 // pred_fallthru
    _
  // Predicated region
  $region34: #{tpu_custom_call.1} parent=0 // pred_check
    _
  $region35: #{tpu_custom_call.1} parent=0 // pred_check_branch
    %288 = sbr.rel (0) target = $region37
  $region36: #{tpu_custom_call.1} parent=0 // pred_region
    _
  $region37: #{tpu_custom_call.1} parent=0 // pred_fallthru
    _

</llo_original>
